<compile_context>
chip_gen: v6e
topology: v6e:2x2x1
jax: 0.10.0
libtpu: 0.0.40
codegen_flags: <defaults>
</compile_context>

<pallas_src>
import jax
import jax.numpy as jnp
from jax.experimental import pallas as pl
from jax.experimental.pallas import tpu as pltpu


_VMEM = pl.BlockSpec(memory_space=pltpu.MemorySpace.VMEM)


# ----------------------------------------------------------------------------
# Kernels
# ----------------------------------------------------------------------------
def gamma_beta_kernel(fv_ref, w1g_ref, b1g_ref, w2g_ref, b2g_ref,
                      w1b_ref, b1b_ref, w2b_ref, b2b_ref,
                      gamma_ref, beta_ref):
    """Two tiny 2-layer MLPs -> gamma/beta [B, D_out] in f32. Runs once."""
    fv = fv_ref[...].astype(jnp.float32)
    hg = jnp.maximum(
        jnp.dot(fv, w1g_ref[...], preferred_element_type=jnp.float32)
        + b1g_ref[...], 0.0)
    gamma_ref[...] = (
        jnp.dot(hg, w2g_ref[...], preferred_element_type=jnp.float32)
        + b2g_ref[...]).astype(gamma_ref.dtype)
    hb = jnp.maximum(
        jnp.dot(fv, w1b_ref[...], preferred_element_type=jnp.float32)
        + b1b_ref[...], 0.0)
    beta_ref[...] = (
        jnp.dot(hb, w2b_ref[...], preferred_element_type=jnp.float32)
        + b2b_ref[...]).astype(beta_ref.dtype)


def modulate_kernel(g_ref, b_ref, x_ref, o_ref):
    """HBM-bound FMA stream: out = gamma * x + beta.

    gamma/beta blocks are (1, 1, L); they broadcast along the sublane axis
    against the (1, TILE, L) enc block, so no materialized per-tile gamma/beta
    slabs and no per-tile matmuls.  Used by both the lane-dense flattened path
    (L = 128) and the general fallback path (L = D).
    """
    g = g_ref[...].astype(jnp.float32)
    b = b_ref[...].astype(jnp.float32)
    x = x_ref[...].astype(jnp.float32)
    o_ref[...] = (g * x + b).astype(o_ref.dtype)


def modulator_kernel_flat(fv_ref, w1g_ref, b1g_ref, w2g_ref, b2g_ref,
                          w1b_ref, b1b_ref, w2b_ref, b2b_ref,
                          enc_ref, out_ref):
    """second=True path: enc_out [B, D_out]; fully fused (single tiny launch)."""
    fv = fv_ref[...].astype(jnp.float32)
    hg = jnp.maximum(
        jnp.dot(fv, w1g_ref[...], preferred_element_type=jnp.float32)
        + b1g_ref[...], 0.0)
    gamma = (jnp.dot(hg, w2g_ref[...], preferred_element_type=jnp.float32)
             + b2g_ref[...])
    hb = jnp.maximum(
        jnp.dot(fv, w1b_ref[...], preferred_element_type=jnp.float32)
        + b1b_ref[...], 0.0)
    beta = (jnp.dot(hb, w2b_ref[...], preferred_element_type=jnp.float32)
            + b2b_ref[...])
    out_ref[...] = (gamma * enc_ref[...].astype(jnp.float32)
                    + beta).astype(out_ref.dtype)


# ----------------------------------------------------------------------------
# Parameter init (matches the PyTorch nn.Linear layers; weights stored [in, out])
# ----------------------------------------------------------------------------
def init_modulator_params(key, in_dim, hidden_dim, out_dim, dtype=jnp.float32):
    keys = jax.random.split(key, 8)

    def linear(kw, kb, fan_in, fan_out):
        bound = 1.0 / jnp.sqrt(fan_in)
        w = jax.random.uniform(kw, (fan_in, fan_out), dtype, -bound, bound)
        b = jax.random.uniform(kb, (1, fan_out), dtype, -bound, bound)
        return w, b

    w1g, b1g = linear(keys[0], keys[1], in_dim, hidden_dim)
    w2g, b2g = linear(keys[2], keys[3], hidden_dim, out_dim)
    w1b, b1b = linear(keys[4], keys[5], in_dim, hidden_dim)
    w2b, b2b = linear(keys[6], keys[7], hidden_dim, out_dim)
    return dict(w1g=w1g, b1g=b1g, w2g=w2g, b2g=b2g,
                w1b=w1b, b1b=b1b, w2b=w2b, b2b=b2b)


# ----------------------------------------------------------------------------
# Tiling helpers
# ----------------------------------------------------------------------------
def _sublane_multiple(dtype):
    """Min sublane tiling for the dtype: 8 (4B) / 16 (2B) / 32 (1B)."""
    return {4: 8, 2: 16, 1: 32}.get(jnp.dtype(dtype).itemsize, 8)


def _choose_tile_rows(n_rows, target, sub, min_steps=4):
    """tile_r for the lane-dense path: divides n_rows exactly, is a multiple
    of `sub` (or equals the full dim when n_rows < sub), capped by `target`
    and so the j axis gets >= min_steps grid steps (pipelining + megacore)
    when possible.  Returns None when no sublane-aligned divisor exists."""
    if n_rows % sub != 0:
        return n_rows if n_rows < sub else None
    cap = min(target, n_rows)
    steps = min(min_steps, n_rows // sub)
    if steps >= 2:
        cap = min(cap, n_rows // steps)
    cap = max(sub, (cap // sub) * sub)
    for cand in range(cap, sub - 1, -sub):
        if n_rows % cand == 0:
            return cand
    return sub


def _choose_seq_tile(S, D, itemsize, sub, target_bytes=1 << 20, min_steps=4):
    """TILE_S for the fallback path: sublane-aligned (or full S when S < sub),
    ~<= 1 MiB per block, with a mild cap for multi-step grids."""
    if S <= sub:
        return S
    cap = max(sub, (target_bytes // max(1, D * itemsize)) // sub * sub)
    cap = min(cap, (S // sub) * sub)
    if S // sub >= min_steps:
        cap = min(cap, max(sub, (S // min_steps) // sub * sub))
    return max(sub, cap)


# ----------------------------------------------------------------------------
# Wrapper
# ----------------------------------------------------------------------------
def _gamma_beta(params, feature_vec, out_dim):
    """One-shot Pallas call computing gamma/beta [B, D_out] in f32."""
    p = params
    B = feature_vec.shape[0]
    args = (feature_vec,
            p["w1g"], p["b1g"], p["w2g"], p["b2g"],
            p["w1b"], p["b1b"], p["w2b"], p["b2b"])
    return pl.pallas_call(
        gamma_beta_kernel,
        out_shape=(jax.ShapeDtypeStruct((B, out_dim), jnp.float32),
                   jax.ShapeDtypeStruct((B, out_dim), jnp.float32)),
        in_specs=[_VMEM] * len(args),
        out_specs=(_VMEM, _VMEM),
    )(*args)


def modulator_forward(params, enc_out, feature_vec, second=False,
                      tile_rows_target=2048, min_grid_steps=4):
    p = params
    out_dtype = enc_out.dtype

    if second:
        # Tiny [B, D_out] problem: one fused launch beats any tiling.
        args = (feature_vec,
                p["w1g"], p["b1g"], p["w2g"], p["b2g"],
                p["w1b"], p["b1b"], p["w2b"], p["b2b"],
                enc_out)
        return pl.pallas_call(
            modulator_kernel_flat,
            out_shape=jax.ShapeDtypeStruct(enc_out.shape, out_dtype),
            in_specs=[_VMEM] * len(args),
            out_specs=_VMEM,
        )(*args)

    B, S, D = enc_out.shape
    gamma, beta = _gamma_beta(params, feature_vec, D)

    # Conditioning operands carried in the enc dtype (halves their DMA/VMEM
    # for bf16 inputs); compute is upcast to f32 inside the kernel.
    cond_dtype = (out_dtype if jnp.issubdtype(out_dtype, jnp.floating)
                  else jnp.float32)
    sub = _sublane_multiple(out_dtype)
    dims_parallel = pltpu.CompilerParams(
        dimension_semantics=("parallel", "parallel"))

    W = S * D
    if W % 128 == 0 and 128 % D == 0:
        # Lane-dense flattened path: gamma pattern is identical on every
        # 128-lane row since D | 128, so a single (B, 1, 128) row suffices.
        n_rows = W // 128
        tile_r = _choose_tile_rows(n_rows, tile_rows_target, sub,
                                   min_grid_steps)
        if tile_r is not None:
            rep = 128 // D
            g128 = jnp.tile(gamma, (1, rep)) if rep > 1 else gamma  # (B, 128)
            b128 = jnp.tile(beta, (1, rep)) if rep > 1 else beta
            gamma_row = g128[:, None, :].astype(cond_dtype)         # (B,1,128)
            beta_row = b128[:, None, :].astype(cond_dtype)
            enc_flat = enc_out.reshape(B, n_rows, 128)              # free

            out_flat = pl.pallas_call(
                modulate_kernel,
                out_shape=jax.ShapeDtypeStruct((B, n_rows, 128), out_dtype),
                grid=(B, n_rows // tile_r),
                in_specs=[
                    pl.BlockSpec((1, 1, 128), lambda b, j: (b, 0, 0)),
                    pl.BlockSpec((1, 1, 128), lambda b, j: (b, 0, 0)),
                    pl.BlockSpec((1, tile_r, 128), lambda b, j: (b, j, 0)),
                ],
                out_specs=pl.BlockSpec((1, tile_r, 128),
                                       lambda b, j: (b, j, 0)),
                compiler_params=dims_parallel,
            )(gamma_row, beta_row, enc_flat)
            return out_flat.reshape(B, S, D)

    # General streamed fallback: blocks (1, TILE_S, D) over the original
    # layout (last dim == full D is always a legal block shape; lane-masked
    # stores when D % 128 != 0, but it streams + double-buffers on any shape
    # instead of holding whole arrays in VMEM).
    itemsize = jnp.dtype(out_dtype).itemsize
    ts = _choose_seq_tile(S, D, itemsize, sub, min_steps=min_grid_steps)
    gamma_row = gamma[:, None, :].astype(cond_dtype)   # (B, 1, D)
    beta_row = beta[:, None, :].astype(cond_dtype)
    return pl.pallas_call(
        modulate_kernel,
        out_shape=jax.ShapeDtypeStruct((B, S, D), out_dtype),
        grid=(B, pl.cdiv(S, ts)),
        in_specs=[
            pl.BlockSpec((1, 1, D), lambda b, s: (b, 0, 0)),
            pl.BlockSpec((1, 1, D), lambda b, s: (b, 0, 0)),
            pl.BlockSpec((1, ts, D), lambda b, s: (b, s, 0)),
        ],
        out_specs=pl.BlockSpec((1, ts, D), lambda b, s: (b, s, 0)),
        compiler_params=dims_parallel,
    )(gamma_row, beta_row, enc_out)


# Pure-JAX reference for verification.
def modulator_ref(params, enc_out, feature_vec, second=False):
    p = params
    hg = jnp.maximum(feature_vec @ p["w1g"] + p["b1g"], 0.0)
    gamma = hg @ p["w2g"] + p["b2g"]
    hb = jnp.maximum(feature_vec @ p["w1b"] + p["b1b"], 0.0)
    beta = hb @ p["w2b"] + p["b2b"]
    if second:
        return gamma * enc_out + beta
    return gamma[:, None, :] * enc_out + beta[:, None, :]


# ----------------------------------------------------------------------------
# Main
# ----------------------------------------------------------------------------
if __name__ == "__main__":
    B = 2
    in_dim, hidden_dim, out_dim = 16, 32, 16

    key = jax.random.PRNGKey(0)
    (k_params, k_fv, k_a, k_b, k_d, k_p24, k_e, k_2) = jax.random.split(key, 8)

    params = init_modulator_params(k_params, in_dim, hidden_dim, out_dim)
    feature_vec = jax.random.normal(k_fv, (B, in_dim), jnp.float32)

    def check(out, ref):
        assert out.shape == ref.shape
        assert jnp.allclose(out, ref, atol=1e-5, rtol=1e-5)

    # --- second=False, tiny sequence (lane-dense path, single block) ---
    enc_a = jax.random.normal(k_a, (B, 8, out_dim), jnp.float32)
    out_a = jax.block_until_ready(
        modulator_forward(params, enc_a, feature_vec, second=False))
    check(out_a, modulator_ref(params, enc_a, feature_vec, second=False))

    # --- second=False, longer sequence: lane-dense multi-step streamed grid
    #     (default target -> tile_r capped for >=4 j-steps per batch row) ---
    enc_b = jax.random.normal(k_b, (B, 1024, out_dim), jnp.float32)
    ref_b = modulator_ref(params, enc_b, feature_vec, second=False)
    out_b = jax.block_until_ready(
        modulator_forward(params, enc_b, feature_vec, second=False))
    check(out_b, ref_b)

    # Same sequence with a small tile target -> many grid steps.
    out_c = jax.block_until_ready(
        modulator_forward(params, enc_b, feature_vec, second=False,
                          tile_rows_target=8))
    check(out_c, ref_b)

    # --- second=False, awkward shape (S*D % 128 != 0) -> streamed fallback
    #     with a ragged final block ---
    enc_d = jax.random.normal(k_d, (B, 10, out_dim), jnp.float32)
    out_d = jax.block_until_ready(
        modulator_forward(params, enc_d, feature_vec, second=False))
    check(out_d, modulator_ref(params, enc_d, feature_vec, second=False))

    # --- second=False, D that does not divide 128 -> streamed fallback ---
    params24 = init_modulator_params(k_p24, in_dim, hidden_dim, 24)
    enc_e = jax.random.normal(k_e, (B, 12, 24), jnp.float32)
    out_e = jax.block_until_ready(
        modulator_forward(params24, enc_e, feature_vec, second=False))
    check(out_e, modulator_ref(params24, enc_e, feature_vec, second=False))

    # --- second=True path ([B, D_out], fully fused) ---
    enc2 = jax.random.normal(k_2, (B, out_dim), jnp.float32)
    out2 = jax.block_until_ready(
        modulator_forward(params, enc2, feature_vec, second=True))
    check(out2, modulator_ref(params, enc2, feature_vec, second=True))

    print("KERNEL_OK")
</pallas_src>

<mosaic_0001>
module attributes {stable_mosaic.version = 11 : i64} {
  func.func @gamma_beta_kernel(%arg0: memref<2x16xf32, #tpu.memory_space<vmem>>, %arg1: memref<16x32xf32, #tpu.memory_space<vmem>>, %arg2: memref<1x32xf32, #tpu.memory_space<vmem>>, %arg3: memref<32x16xf32, #tpu.memory_space<vmem>>, %arg4: memref<1x16xf32, #tpu.memory_space<vmem>>, %arg5: memref<16x32xf32, #tpu.memory_space<vmem>>, %arg6: memref<1x32xf32, #tpu.memory_space<vmem>>, %arg7: memref<32x16xf32, #tpu.memory_space<vmem>>, %arg8: memref<1x16xf32, #tpu.memory_space<vmem>>, %arg9: memref<2x16xf32, #tpu.memory_space<vmem>>, %arg10: memref<2x16xf32, #tpu.memory_space<vmem>>) attributes {dimension_semantics = [], scalar_prefetch = 0 : i64, scratch_operands = 0 : i64, tpu.core_type = #tpu.core_type<tc>} {
    %c0 = arith.constant 0 : index
    %c0_0 = arith.constant 0 : index
    %0 = vector.load %arg0[%c0, %c0_0] : memref<2x16xf32, #tpu.memory_space<vmem>>, vector<2x16xf32>
    %c0_1 = arith.constant 0 : index
    %c0_2 = arith.constant 0 : index
    %1 = vector.load %arg1[%c0_1, %c0_2] : memref<16x32xf32, #tpu.memory_space<vmem>>, vector<16x32xf32>
    %cst = arith.constant dense<0.000000e+00> : vector<2x32xf32>
    %2 = tpu.matmul %0, %1, %cst {dimension_numbers = #tpu.dot_dimension_numbers<[1], [0], [0], [1], [0, 0, 1, 1], [], []>} : vector<2x16xf32>, vector<16x32xf32>, vector<2x32xf32> -> vector<2x32xf32>
    %c0_3 = arith.constant 0 : index
    %c0_4 = arith.constant 0 : index
    %3 = vector.load %arg2[%c0_3, %c0_4] : memref<1x32xf32, #tpu.memory_space<vmem>>, vector<1x32xf32>
    %4 = vector.broadcast %3 : vector<1x32xf32> to vector<2x32xf32>
    %5 = arith.addf %2, %4 : vector<2x32xf32>
    %cst_5 = arith.constant 0.000000e+00 : f32
    %6 = vector.broadcast %cst_5 : f32 to vector<2x32xf32>
    %7 = arith.maximumf %5, %6 : vector<2x32xf32>
    %c0_6 = arith.constant 0 : index
    %c0_7 = arith.constant 0 : index
    %8 = vector.load %arg3[%c0_6, %c0_7] : memref<32x16xf32, #tpu.memory_space<vmem>>, vector<32x16xf32>
    %cst_8 = arith.constant dense<0.000000e+00> : vector<2x16xf32>
    %9 = tpu.matmul %7, %8, %cst_8 {dimension_numbers = #tpu.dot_dimension_numbers<[1], [0], [0], [1], [0, 0, 1, 1], [], []>} : vector<2x32xf32>, vector<32x16xf32>, vector<2x16xf32> -> vector<2x16xf32>
    %c0_9 = arith.constant 0 : index
    %c0_10 = arith.constant 0 : index
    %10 = vector.load %arg4[%c0_9, %c0_10] : memref<1x16xf32, #tpu.memory_space<vmem>>, vector<1x16xf32>
    %11 = vector.broadcast %10 : vector<1x16xf32> to vector<2x16xf32>
    %12 = arith.addf %9, %11 : vector<2x16xf32>
    %c0_11 = arith.constant 0 : index
    %c0_12 = arith.constant 0 : index
    %13 = vector.load %arg9[%c0_11, %c0_12] : memref<2x16xf32, #tpu.memory_space<vmem>>, vector<2x16xf32>
    tpu.vector_store %arg9[%c0_11, %c0_12], %12 {strides = array<i32>} : memref<2x16xf32, #tpu.memory_space<vmem>>, vector<2x16xf32>,
    %c0_13 = arith.constant 0 : index
    %c0_14 = arith.constant 0 : index
    %14 = vector.load %arg5[%c0_13, %c0_14] : memref<16x32xf32, #tpu.memory_space<vmem>>, vector<16x32xf32>
    %cst_15 = arith.constant dense<0.000000e+00> : vector<2x32xf32>
    %15 = tpu.matmul %0, %14, %cst_15 {dimension_numbers = #tpu.dot_dimension_numbers<[1], [0], [0], [1], [0, 0, 1, 1], [], []>} : vector<2x16xf32>, vector<16x32xf32>, vector<2x32xf32> -> vector<2x32xf32>
    %c0_16 = arith.constant 0 : index
    %c0_17 = arith.constant 0 : index
    %16 = vector.load %arg6[%c0_16, %c0_17] : memref<1x32xf32, #tpu.memory_space<vmem>>, vector<1x32xf32>
    %17 = vector.broadcast %16 : vector<1x32xf32> to vector<2x32xf32>
    %18 = arith.addf %15, %17 : vector<2x32xf32>
    %cst_18 = arith.constant 0.000000e+00 : f32
    %19 = vector.broadcast %cst_18 : f32 to vector<2x32xf32>
    %20 = arith.maximumf %18, %19 : vector<2x32xf32>
    %c0_19 = arith.constant 0 : index
    %c0_20 = arith.constant 0 : index
    %21 = vector.load %arg7[%c0_19, %c0_20] : memref<32x16xf32, #tpu.memory_space<vmem>>, vector<32x16xf32>
    %cst_21 = arith.constant dense<0.000000e+00> : vector<2x16xf32>
    %22 = tpu.matmul %20, %21, %cst_21 {dimension_numbers = #tpu.dot_dimension_numbers<[1], [0], [0], [1], [0, 0, 1, 1], [], []>} : vector<2x32xf32>, vector<32x16xf32>, vector<2x16xf32> -> vector<2x16xf32>
    %c0_22 = arith.constant 0 : index
    %c0_23 = arith.constant 0 : index
    %23 = vector.load %arg8[%c0_22, %c0_23] : memref<1x16xf32, #tpu.memory_space<vmem>>, vector<1x16xf32>
    %24 = vector.broadcast %23 : vector<1x16xf32> to vector<2x16xf32>
    %25 = arith.addf %22, %24 : vector<2x16xf32>
    %c0_24 = arith.constant 0 : index
    %c0_25 = arith.constant 0 : index
    %26 = vector.load %arg10[%c0_24, %c0_25] : memref<2x16xf32, #tpu.memory_space<vmem>>, vector<2x16xf32>
    tpu.vector_store %arg10[%c0_24, %c0_25], %25 {strides = array<i32>} : memref<2x16xf32, #tpu.memory_space<vmem>>, vector<2x16xf32>,
    return
  }
}

</mosaic_0001>

<llo_original>
// kernel: tpu_custom_call.1
$region0: #{tpu_custom_call.1}
  #allocation0 [shape = 'u32[]', space=smem, size = 0x4, offset = 0x4, fixed_abs, tag = 'smem constant byte address 0x4 - core index']
  #allocation1 [shape = 'u32[144,128]{1,0:T(1,128)}', space=vmem, size = 0x12000, scoped, tag = 'internal scratch']
  %s0 = inlined_call_operand.vmem [shape: f32[2,16], index: 0, kind: input, shape index: {}]
  %s1 = inlined_call_operand.vmem [shape: f32[16,32], index: 1, kind: input, shape index: {}]
  %s2 = inlined_call_operand.vmem [shape: f32[1,32], index: 2, kind: input, shape index: {}]
  %s3 = inlined_call_operand.vmem [shape: f32[32,16], index: 3, kind: input, shape index: {}]
  %s4 = inlined_call_operand.vmem [shape: f32[1,16], index: 4, kind: input, shape index: {}]
  %s5 = inlined_call_operand.vmem [shape: f32[16,32], index: 5, kind: input, shape index: {}]
  %s6 = inlined_call_operand.vmem [shape: f32[1,32], index: 6, kind: input, shape index: {}]
  %s7 = inlined_call_operand.vmem [shape: f32[32,16], index: 7, kind: input, shape index: {}]
  %s8 = inlined_call_operand.vmem [shape: f32[1,16], index: 8, kind: input, shape index: {}]
  %s9 = inlined_call_operand.hbm [shape: f32[2,16], index: 9, kind: output, shape index: {0}]
  %s10 = inlined_call_operand.hbm [shape: f32[2,16], index: 10, kind: output, shape index: {1}]
  %11 = xla_tuple %s9, %s10
  %s12 = sld [smem:[#allocation0]]
  $region54: #{tpu_custom_call.1} parent=0
    _
  %s14 = ssub.s32 1, %s12
  %s15 = scalar_select 0, %s14, %s12
  $region1: #{tpu_custom_call.1} parent=0
    #allocation2 [shape = 'u8[1024]{0}', space=vmem, size = 0x400, scoped, tag = 'output window, operand 0, single buffered']
    #allocation3 [shape = 's32[1]{0}', space=sflag, size = 0x4, scoped, tag = 'scoped memory for tpu_custom_call.1']
    #allocation4 [shape = 'u8[1024]{0}', space=vmem, size = 0x400, scoped, tag = 'output window, operand 1, single buffered']
    #allocation5 [shape = 's32[1]{0}', space=sflag, size = 0x4, scoped, tag = 'scoped memory for tpu_custom_call.1']
    %16 = vsyncpa [#allocation3], 0
    %17 = vsyncpa [#allocation5], 0
    // Predicated region
    $region2: #{tpu_custom_call.1} parent=1 // pred_check
      _
    $region3: #{tpu_custom_call.1} parent=1 // pred_check_branch
      %19 = sbr.rel (0) target = $region5
    $region4: #{tpu_custom_call.1} parent=1 // pred_region
      _
    $region5: #{tpu_custom_call.1} parent=1 // pred_fallthru
      _
    // Predicated region
    $region6: #{tpu_custom_call.1} parent=1 // pred_check
      _
    $region7: #{tpu_custom_call.1} parent=1 // pred_check_branch
      %21 = sbr.rel (0) target = $region9
    $region8: #{tpu_custom_call.1} parent=1 // pred_region
      _
    $region9: #{tpu_custom_call.1} parent=1 // pred_fallthru
      _
    // Predicated region
    $region10: #{tpu_custom_call.1} parent=1 // pred_check
      _
    $region11: #{tpu_custom_call.1} parent=1 // pred_check_branch
      %23 = sbr.rel (0) target = $region13
    $region12: #{tpu_custom_call.1} parent=1 // pred_region
      _
    $region13: #{tpu_custom_call.1} parent=1 // pred_fallthru
      _
    // Predicated region
    $region14: #{tpu_custom_call.1} parent=1 // pred_check
      _
    $region15: #{tpu_custom_call.1} parent=1 // pred_check_branch
      %25 = sbr.rel (0) target = $region17
    $region16: #{tpu_custom_call.1} parent=1 // pred_region
      _
    $region17: #{tpu_custom_call.1} parent=1 // pred_fallthru
      _
    // Predicated region
    $region18: #{tpu_custom_call.1} parent=1 // pred_check
      _
    $region19: #{tpu_custom_call.1} parent=1 // pred_check_branch
      %27 = sbr.rel (0) target = $region21
    $region20: #{tpu_custom_call.1} parent=1 // pred_region
      _
    $region21: #{tpu_custom_call.1} parent=1 // pred_fallthru
      _
    // Predicated region
    $region22: #{tpu_custom_call.1} parent=1 // pred_check
      _
    $region23: #{tpu_custom_call.1} parent=1 // pred_check_branch
      %29 = sbr.rel (0) target = $region25
    $region24: #{tpu_custom_call.1} parent=1 // pred_region
      _
    $region25: #{tpu_custom_call.1} parent=1 // pred_fallthru
      _
    // Predicated region
    $region26: #{tpu_custom_call.1} parent=1 // pred_check
      _
    $region27: #{tpu_custom_call.1} parent=1 // pred_check_branch
      %31 = sbr.rel (0) target = $region29
    $region28: #{tpu_custom_call.1} parent=1 // pred_region
      _
    $region29: #{tpu_custom_call.1} parent=1 // pred_fallthru
      _
    // Predicated region
    $region30: #{tpu_custom_call.1} parent=1 // pred_check
      _
    $region31: #{tpu_custom_call.1} parent=1 // pred_check_branch
      %33 = sbr.rel (0) target = $region33
    $region32: #{tpu_custom_call.1} parent=1 // pred_region
      _
    $region33: #{tpu_custom_call.1} parent=1 // pred_fallthru
      _
    // Predicated region
    $region34: #{tpu_custom_call.1} parent=1 // pred_check
      _
    $region35: #{tpu_custom_call.1} parent=1 // pred_check_branch
      %35 = sbr.rel (0) target = $region37
    $region36: #{tpu_custom_call.1} parent=1 // pred_region
      _
    $region37: #{tpu_custom_call.1} parent=1 // pred_fallthru
      _
    %v36 = vld [vmem:[%s0] sm:$0x3]
    %v37 = vld [vmem:[%s1] sm:$0xff]
    %v38 = vld [vmem:[%s1 + $0x8] sm:$0xff]
    %v39 = vld [vmem:[%s2] sm:$0x1]
    %v41 = vlaneseq
    %v42 = vshrl.u32 %v41, 7
    %v43 = vsub.s32 0, %v42
    %v44 = vrot.slane %v39, %v43
    %vm46 = vcmask 130048
    %v48 = vsel %vm46, %v36, 0
    %50 = vmatprep.subr.mxu0 0.0
    %51 = vmatpush1.msra.mxu0 0.0
    %52 = vmatprep.subr.mxu0 0.0
    %53 = vmatpush1.msra.mxu0 0.0
    %54 = vmatprep.subr.mxu0 0.0
    %55 = vmatpush1.msra.mxu0 0.0
    %56 = vmatprep.subr.mxu0 0.0
    %57 = vmatpush1.msra.mxu0 0.0
    %58 = vmatprep.subr.mxu0 0.0
    %59 = vmatpush1.msra.mxu0 0.0
    %60 = vmatprep.subr.mxu0 0.0
    %61 = vmatpush1.msra.mxu0 0.0
    %62 = vmatprep.subr.mxu0 0.0
    %63 = vmatpush1.msra.mxu0 0.0
    %64 = vmatprep.subr.mxu0 0.0
    %65 = vmatpush1.msra.mxu0 0.0
    %66 = vmatprep.subr.mxu0 0.0
    %67 = vmatpush1.msra.mxu0 0.0
    %68 = vmatprep.subr.mxu0 0.0
    %69 = vmatpush1.msra.mxu0 0.0
    %70 = vmatprep.subr.mxu0 0.0
    %71 = vmatpush1.msra.mxu0 0.0
    %72 = vmatprep.subr.mxu0 0.0
    %73 = vmatpush1.msra.mxu0 0.0
    %74 = vmatprep.subr.mxu0 0.0
    %75 = vmatpush1.msra.mxu0 0.0
    %76 = vmatprep.subr.mxu0 0.0
    %77 = vmatpush1.msra.mxu0 0.0
    %78 = vmatprep.subr.mxu0 0.0
    %79 = vmatpush1.msra.mxu0 %v38
    %80 = vmatprep.subr.mxu0 0.0
    %81 = vmatpush1.msra.mxu0 %v37
    %82 = vmatprep.subr.mxu0 0.0
    %83 = vmatpush2.msra.mxu0 0.0
    %84 = vmatprep.subr.mxu0 0.0
    %85 = vmatpush2.msra.mxu0 0.0
    %86 = vmatprep.subr.mxu0 0.0
    %87 = vmatpush2.msra.mxu0 0.0
    %88 = vmatprep.subr.mxu0 0.0
    %89 = vmatpush2.msra.mxu0 0.0
    %90 = vmatprep.subr.mxu0 0.0
    %91 = vmatpush2.msra.mxu0 0.0
    %92 = vmatprep.subr.mxu0 0.0
    %93 = vmatpush2.msra.mxu0 0.0
    %94 = vmatprep.subr.mxu0 0.0
    %95 = vmatpush2.msra.mxu0 0.0
    %96 = vmatprep.subr.mxu0 0.0
    %97 = vmatpush2.msra.mxu0 0.0
    %98 = vmatprep.subr.mxu0 0.0
    %99 = vmatpush2.msra.mxu0 0.0
    %100 = vmatprep.subr.mxu0 0.0
    %101 = vmatpush2.msra.mxu0 0.0
    %102 = vmatprep.subr.mxu0 0.0
    %103 = vmatpush2.msra.mxu0 0.0
    %104 = vmatprep.subr.mxu0 0.0
    %105 = vmatpush2.msra.mxu0 0.0
    %106 = vmatprep.subr.mxu0 0.0
    %107 = vmatpush2.msra.mxu0 0.0
    %108 = vmatprep.subr.mxu0 0.0
    %109 = vmatpush2.msra.mxu0 0.0
    %110 = vmatprep.subr.mxu0 0.0
    %111 = vmatpush2.msra.mxu0 0.0
    %112 = vmatprep.subr.mxu0 0.0
    %113 = vmatpush2.msra.mxu0 0.0
    %114 = vmatprep.mubr.f32.mxu0 0.0
    %115 = vmatmul.mubr.f32.gmra.mxu0 %v48
    %v116 = vpop.f32.mrf.mxu0
    %v117 = vadd.f32 %v44, %v116
    %v118 = vpop.f32.mrf.mxu0
    %119 = vdwg.mxu0
    %v120 = vmax.f32 %v117, 0.0
    %v121 = vld [vmem:[%s3] sm:$0xff]
    %v122 = vld [vmem:[%s3 + $0x8] sm:$0xff]
    %v123 = vld [vmem:[%s3 + $0x10] sm:$0xff]
    %v124 = vld [vmem:[%s3 + $0x18] sm:$0xff]
    %v125 = vld [vmem:[%s4] sm:$0x1]
    %v127 = vlaneseq
    %v128 = vshrl.u32 %v127, 7
    %v129 = vsub.s32 0, %v128
    %v130 = vrot.slane %v125, %v129
    %vm132 = vcmask 261120
    %v134 = vsel %vm132, %v120, 0
    %136 = vmatprep.subr.mxu0 0.0
    %137 = vmatpush1.msra.mxu0 0.0
    %138 = vmatprep.subr.mxu0 0.0
    %139 = vmatpush1.msra.mxu0 0.0
    %140 = vmatprep.subr.mxu0 0.0
    %141 = vmatpush1.msra.mxu0 0.0
    %142 = vmatprep.subr.mxu0 0.0
    %143 = vmatpush1.msra.mxu0 0.0
    %144 = vmatprep.subr.mxu0 0.0
    %145 = vmatpush1.msra.mxu0 0.0
    %146 = vmatprep.subr.mxu0 0.0
    %147 = vmatpush1.msra.mxu0 0.0
    %148 = vmatprep.subr.mxu0 0.0
    %149 = vmatpush1.msra.mxu0 0.0
    %150 = vmatprep.subr.mxu0 0.0
    %151 = vmatpush1.msra.mxu0 0.0
    %152 = vmatprep.subr.mxu0 0.0
    %153 = vmatpush1.msra.mxu0 0.0
    %154 = vmatprep.subr.mxu0 0.0
    %155 = vmatpush1.msra.mxu0 0.0
    %156 = vmatprep.subr.mxu0 0.0
    %157 = vmatpush1.msra.mxu0 0.0
    %158 = vmatprep.subr.mxu0 0.0
    %159 = vmatpush1.msra.mxu0 0.0
    %160 = vmatprep.subr.mxu0 0.0
    %161 = vmatpush1.msra.mxu0 %v124
    %162 = vmatprep.subr.mxu0 0.0
    %163 = vmatpush1.msra.mxu0 %v123
    %164 = vmatprep.subr.mxu0 0.0
    %165 = vmatpush1.msra.mxu0 %v122
    %166 = vmatprep.subr.mxu0 0.0
    %167 = vmatpush1.msra.mxu0 %v121
    %168 = vmatprep.subr.mxu0 0.0
    %169 = vmatpush2.msra.mxu0 0.0
    %170 = vmatprep.subr.mxu0 0.0
    %171 = vmatpush2.msra.mxu0 0.0
    %172 = vmatprep.subr.mxu0 0.0
    %173 = vmatpush2.msra.mxu0 0.0
    %174 = vmatprep.subr.mxu0 0.0
    %175 = vmatpush2.msra.mxu0 0.0
    %176 = vmatprep.subr.mxu0 0.0
    %177 = vmatpush2.msra.mxu0 0.0
    %178 = vmatprep.subr.mxu0 0.0
    %179 = vmatpush2.msra.mxu0 0.0
    %180 = vmatprep.subr.mxu0 0.0
    %181 = vmatpush2.msra.mxu0 0.0
    %182 = vmatprep.subr.mxu0 0.0
    %183 = vmatpush2.msra.mxu0 0.0
    %184 = vmatprep.subr.mxu0 0.0
    %185 = vmatpush2.msra.mxu0 0.0
    %186 = vmatprep.subr.mxu0 0.0
    %187 = vmatpush2.msra.mxu0 0.0
    %188 = vmatprep.subr.mxu0 0.0
    %189 = vmatpush2.msra.mxu0 0.0
    %190 = vmatprep.subr.mxu0 0.0
    %191 = vmatpush2.msra.mxu0 0.0
    %192 = vmatprep.subr.mxu0 0.0
    %193 = vmatpush2.msra.mxu0 0.0
    %194 = vmatprep.subr.mxu0 0.0
    %195 = vmatpush2.msra.mxu0 0.0
    %196 = vmatprep.subr.mxu0 0.0
    %197 = vmatpush2.msra.mxu0 0.0
    %198 = vmatprep.subr.mxu0 0.0
    %199 = vmatpush2.msra.mxu0 0.0
    %200 = vmatprep.mubr.f32.mxu0 0.0
    %201 = vmatmul.mubr.f32.gmra.mxu0 %v134
    %v202 = vpop.f32.mrf.mxu0
    %v203 = vadd.f32 %v130, %v202
    %v204 = vpop.f32.mrf.mxu0
    %205 = vdwg.mxu0
    %vm206 = vcmask 123904
    %207 = vst.msk [vmem:[#allocation2] sm:$0x3] %vm206, %v203
    %v208 = vld [vmem:[%s5] sm:$0xff]
    %v209 = vld [vmem:[%s5 + $0x8] sm:$0xff]
    %v210 = vld [vmem:[%s6] sm:$0x1]
    %v212 = vlaneseq
    %v213 = vshrl.u32 %v212, 7
    %v214 = vsub.s32 0, %v213
    %v215 = vrot.slane %v210, %v214
    %217 = vmatprep.subr.mxu0 0.0
    %218 = vmatpush1.msra.mxu0 0.0
    %219 = vmatprep.subr.mxu0 0.0
    %220 = vmatpush1.msra.mxu0 0.0
    %221 = vmatprep.subr.mxu0 0.0
    %222 = vmatpush1.msra.mxu0 0.0
    %223 = vmatprep.subr.mxu0 0.0
    %224 = vmatpush1.msra.mxu0 0.0
    %225 = vmatprep.subr.mxu0 0.0
    %226 = vmatpush1.msra.mxu0 0.0
    %227 = vmatprep.subr.mxu0 0.0
    %228 = vmatpush1.msra.mxu0 0.0
    %229 = vmatprep.subr.mxu0 0.0
    %230 = vmatpush1.msra.mxu0 0.0
    %231 = vmatprep.subr.mxu0 0.0
    %232 = vmatpush1.msra.mxu0 0.0
    %233 = vmatprep.subr.mxu0 0.0
    %234 = vmatpush1.msra.mxu0 0.0
    %235 = vmatprep.subr.mxu0 0.0
    %236 = vmatpush1.msra.mxu0 0.0
    %237 = vmatprep.subr.mxu0 0.0
    %238 = vmatpush1.msra.mxu0 0.0
    %239 = vmatprep.subr.mxu0 0.0
    %240 = vmatpush1.msra.mxu0 0.0
    %241 = vmatprep.subr.mxu0 0.0
    %242 = vmatpush1.msra.mxu0 0.0
    %243 = vmatprep.subr.mxu0 0.0
    %244 = vmatpush1.msra.mxu0 0.0
    %245 = vmatprep.subr.mxu0 0.0
    %246 = vmatpush1.msra.mxu0 %v209
    %247 = vmatprep.subr.mxu0 0.0
    %248 = vmatpush1.msra.mxu0 %v208
    %249 = vmatprep.subr.mxu0 0.0
    %250 = vmatpush2.msra.mxu0 0.0
    %251 = vmatprep.subr.mxu0 0.0
    %252 = vmatpush2.msra.mxu0 0.0
    %253 = vmatprep.subr.mxu0 0.0
    %254 = vmatpush2.msra.mxu0 0.0
    %255 = vmatprep.subr.mxu0 0.0
    %256 = vmatpush2.msra.mxu0 0.0
    %257 = vmatprep.subr.mxu0 0.0
    %258 = vmatpush2.msra.mxu0 0.0
    %259 = vmatprep.subr.mxu0 0.0
    %260 = vmatpush2.msra.mxu0 0.0
    %261 = vmatprep.subr.mxu0 0.0
    %262 = vmatpush2.msra.mxu0 0.0
    %263 = vmatprep.subr.mxu0 0.0
    %264 = vmatpush2.msra.mxu0 0.0
    %265 = vmatprep.subr.mxu0 0.0
    %266 = vmatpush2.msra.mxu0 0.0
    %267 = vmatprep.subr.mxu0 0.0
    %268 = vmatpush2.msra.mxu0 0.0
    %269 = vmatprep.subr.mxu0 0.0
    %270 = vmatpush2.msra.mxu0 0.0
    %271 = vmatprep.subr.mxu0 0.0
    %272 = vmatpush2.msra.mxu0 0.0
    %273 = vmatprep.subr.mxu0 0.0
    %274 = vmatpush2.msra.mxu0 0.0
    %275 = vmatprep.subr.mxu0 0.0
    %276 = vmatpush2.msra.mxu0 0.0
    %277 = vmatprep.subr.mxu0 0.0
    %278 = vmatpush2.msra.mxu0 0.0
    %279 = vmatprep.subr.mxu0 0.0
    %280 = vmatpush2.msra.mxu0 0.0
    %281 = vmatprep.mubr.f32.mxu0 0.0
    %282 = vmatmul.mubr.f32.gmra.mxu0 %v48
    %v283 = vpop.f32.mrf.mxu0
    %v284 = vadd.f32 %v215, %v283
    %v285 = vpop.f32.mrf.mxu0
    %286 = vdwg.mxu0
    %v287 = vmax.f32 %v284, 0.0
    %v288 = vld [vmem:[%s7] sm:$0xff]
    %v289 = vld [vmem:[%s7 + $0x8] sm:$0xff]
    %v290 = vld [vmem:[%s7 + $0x10] sm:$0xff]
    %v291 = vld [vmem:[%s7 + $0x18] sm:$0xff]
    %v292 = vld [vmem:[%s8] sm:$0x1]
    %v294 = vlaneseq
    %v295 = vshrl.u32 %v294, 7
    %v296 = vsub.s32 0, %v295
    %v297 = vrot.slane %v292, %v296
    %v300 = vsel %vm132, %v287, 0
    %302 = vmatprep.subr.mxu0 0.0
    %303 = vmatpush1.msra.mxu0 0.0
    %304 = vmatprep.subr.mxu0 0.0
    %305 = vmatpush1.msra.mxu0 0.0
    %306 = vmatprep.subr.mxu0 0.0
    %307 = vmatpush1.msra.mxu0 0.0
    %308 = vmatprep.subr.mxu0 0.0
    %309 = vmatpush1.msra.mxu0 0.0
    %310 = vmatprep.subr.mxu0 0.0
    %311 = vmatpush1.msra.mxu0 0.0
    %312 = vmatprep.subr.mxu0 0.0
    %313 = vmatpush1.msra.mxu0 0.0
    %314 = vmatprep.subr.mxu0 0.0
    %315 = vmatpush1.msra.mxu0 0.0
    %316 = vmatprep.subr.mxu0 0.0
    %317 = vmatpush1.msra.mxu0 0.0
    %318 = vmatprep.subr.mxu0 0.0
    %319 = vmatpush1.msra.mxu0 0.0
    %320 = vmatprep.subr.mxu0 0.0
    %321 = vmatpush1.msra.mxu0 0.0
    %322 = vmatprep.subr.mxu0 0.0
    %323 = vmatpush1.msra.mxu0 0.0
    %324 = vmatprep.subr.mxu0 0.0
    %325 = vmatpush1.msra.mxu0 0.0
    %326 = vmatprep.subr.mxu0 0.0
    %327 = vmatpush1.msra.mxu0 %v291
    %328 = vmatprep.subr.mxu0 0.0
    %329 = vmatpush1.msra.mxu0 %v290
    %330 = vmatprep.subr.mxu0 0.0
    %331 = vmatpush1.msra.mxu0 %v289
    %332 = vmatprep.subr.mxu0 0.0
    %333 = vmatpush1.msra.mxu0 %v288
    %334 = vmatprep.subr.mxu0 0.0
    %335 = vmatpush2.msra.mxu0 0.0
    %336 = vmatprep.subr.mxu0 0.0
    %337 = vmatpush2.msra.mxu0 0.0
    %338 = vmatprep.subr.mxu0 0.0
    %339 = vmatpush2.msra.mxu0 0.0
    %340 = vmatprep.subr.mxu0 0.0
    %341 = vmatpush2.msra.mxu0 0.0
    %342 = vmatprep.subr.mxu0 0.0
    %343 = vmatpush2.msra.mxu0 0.0
    %344 = vmatprep.subr.mxu0 0.0
    %345 = vmatpush2.msra.mxu0 0.0
    %346 = vmatprep.subr.mxu0 0.0
    %347 = vmatpush2.msra.mxu0 0.0
    %348 = vmatprep.subr.mxu0 0.0
    %349 = vmatpush2.msra.mxu0 0.0
    %350 = vmatprep.subr.mxu0 0.0
    %351 = vmatpush2.msra.mxu0 0.0
    %352 = vmatprep.subr.mxu0 0.0
    %353 = vmatpush2.msra.mxu0 0.0
    %354 = vmatprep.subr.mxu0 0.0
    %355 = vmatpush2.msra.mxu0 0.0
    %356 = vmatprep.subr.mxu0 0.0
    %357 = vmatpush2.msra.mxu0 0.0
    %358 = vmatprep.subr.mxu0 0.0
    %359 = vmatpush2.msra.mxu0 0.0
    %360 = vmatprep.subr.mxu0 0.0
    %361 = vmatpush2.msra.mxu0 0.0
    %362 = vmatprep.subr.mxu0 0.0
    %363 = vmatpush2.msra.mxu0 0.0
    %364 = vmatprep.subr.mxu0 0.0
    %365 = vmatpush2.msra.mxu0 0.0
    %366 = vmatprep.mubr.f32.mxu0 0.0
    %367 = vmatmul.mubr.f32.gmra.mxu0 %v300
    %v368 = vpop.f32.mrf.mxu0
    %v369 = vadd.f32 %v297, %v368
    %v370 = vpop.f32.mrf.mxu0
    %371 = vdwg.mxu0
    %372 = vst.msk [vmem:[#allocation4] sm:$0x3] %vm206, %v369
    // Predicated region
    $region38: #{tpu_custom_call.1} parent=1 // pred_check
      _
    $region39: #{tpu_custom_call.1} parent=1 // pred_check_branch
      %374 = sbr.rel (0) target = $region41
    $region40: #{tpu_custom_call.1} parent=1 // pred_region
      %s376 = ssub.s32 32, 32
      %377 = vsyncadd [#allocation3], %s376
      %s379 = sshll.u32 [#allocation2], 4
      %s380 = int_to_ptr.vmem [resolvable:$true] %s379
      %382 = dma.vmem_to_hbm [thread:$0]  %s380, 32, %s9, [#allocation3]
    $region41: #{tpu_custom_call.1} parent=1 // pred_fallthru
      _
    // Predicated region
    $region42: #{tpu_custom_call.1} parent=1 // pred_check
      _
    $region43: #{tpu_custom_call.1} parent=1 // pred_check_branch
      %384 = sbr.rel (0) target = $region45
    $region44: #{tpu_custom_call.1} parent=1 // pred_region
      %s386 = ssub.s32 32, 32
      %387 = vsyncadd [#allocation5], %s386
      %s389 = sshll.u32 [#allocation4], 4
      %s390 = int_to_ptr.vmem [resolvable:$true] %s389
      %392 = dma.vmem_to_hbm [thread:$0]  %s390, 32, %s10, [#allocation5]
    $region45: #{tpu_custom_call.1} parent=1 // pred_fallthru
      _
    // Predicated region
    $region46: #{tpu_custom_call.1} parent=1 // pred_check
      _
    $region47: #{tpu_custom_call.1} parent=1 // pred_check_branch
      %394 = sbr.rel (0) target = $region49
    $region48: #{tpu_custom_call.1} parent=1 // pred_region
      %395 = dma.done [#allocation3], 32
    $region49: #{tpu_custom_call.1} parent=1 // pred_fallthru
      _
    // Predicated region
    $region50: #{tpu_custom_call.1} parent=1 // pred_check
      _
    $region51: #{tpu_custom_call.1} parent=1 // pred_check_branch
      %397 = sbr.rel (0) target = $region53
    $region52: #{tpu_custom_call.1} parent=1 // pred_region
      %398 = dma.done [#allocation5], 32
    $region53: #{tpu_custom_call.1} parent=1 // pred_fallthru
      _
    %399 = vsyncpa [#allocation3], 1
    %400 = vsyncpa [#allocation5], 1

</llo_original>
